<compile_context>
chip_gen: v7x
topology: tpu7x:2x2x1
jax: 0.10.0
libtpu: 0.0.40
codegen_flags: <defaults>
</compile_context>

<pallas_src>
import jax
import jax.numpy as jnp
from jax.experimental import pallas as pl
from jax.experimental.pallas import tpu as pltpu

# ---- synthetic "Const" sizes (deterministic, small) ----------------------
N_DLT1 = 3
N_PD = 3          # primary_disease_states
N_ND = 2          # nodal_disease_states
N_CC = 2          # ccs
N_MODS = 2        # modifications
N_DECISIONS = 3

BASELINE = 8                                   # baseline_input_size
HIDDEN = 32                                    # hidden_layers = [32]
OPT_SIZE = 16                                  # opt_layer_size
IM_SIZE = 16                                   # imitation_layer_size
EPS = 0.01
INPUT_MEAN = 0.0                               # registered buffer tensor([0])
INPUT_STD = 1.0                                # registered buffer tensor([1])

INPUT_SIZE = BASELINE + 2 * N_DLT1 + N_PD + N_ND + N_CC + N_MODS + 2   # = 25 (first Linear fan-in)
MODEL_IN = INPUT_SIZE - 2                      # width of x passed to forward (=23)
OUT_SIZE = 2 * N_DECISIONS                     # = 6

# ---- row packing / tiling configuration -----------------------------------
PACK = 5                                       # logical rows per physical row (115/128 ~ 90% lane dense)
PACKED_IN = PACK * MODEL_IN                    # 115
PACKED_HIDDEN = PACK * HIDDEN                  # 160
PACKED_OUT = PACK * OUT_SIZE                   # 30

TILE_ROWS = 1024                               # packed rows / grid step (= 5120 logical rows)
VMEM_LIMIT_BYTES = 32 * 1024 * 1024            # fits all gens (v7x physical is 64 MiB)


# ---- Pallas kernel: folded forward = matmul -> ReLU -> matmul -> sigmoid ----
def decision_kernel(x_ref, w1_ref, b1_ref, w2_ref, b2_ref, o_ref):
    # bf16 x bf16 -> f32 accumulation on the MXU; elementwise math stays f32.
    h = jnp.dot(x_ref[...], w1_ref[...], preferred_element_type=jnp.float32)
    h = jnp.maximum(h + b1_ref[...], 0.0)
    z = jnp.dot(h.astype(jnp.bfloat16), w2_ref[...], preferred_element_type=jnp.float32)
    o_ref[...] = jax.nn.sigmoid(z + b2_ref[...])


# ---- trace-time algebraic folding of params ------------------------------
def _position_token_row(position):
    if position == 0:
        return jnp.array([[0.0, 0.0]], jnp.float32)
    if position == 1:
        return jnp.array([[1.0, 0.0]], jnp.float32)
    if position == 2:
        return jnp.array([[0.0, 1.0]], jnp.float32)
    return jnp.array([[1.0, 1.0]], jnp.float32)


def fold_params(params, position):
    """Fold normalization, position token, and heads+final into (W1, b1, W2, b2) (f32)."""
    w1, b1, wopt, bopt, wim, bim, wf, bf = params

    # normalization (x - mean + eps) / (std + eps) == x * s + c on the baseline cols
    s = 1.0 / (INPUT_STD + EPS)
    c = (EPS - INPUT_MEAN) / (INPUT_STD + EPS)
    w1_in = w1[:MODEL_IN, :]                                   # rows fed by the raw input x
    w1_fold = jnp.concatenate([s * w1_in[:BASELINE, :], w1_in[BASELINE:, :]], axis=0)
    b1_fold = b1 + c * jnp.sum(w1[:BASELINE, :], axis=0, keepdims=True)

    # constant position-token columns fold into the bias
    tok = _position_token_row(position)                        # (1, 2)
    b1_fold = b1_fold + tok @ w1[MODEL_IN:INPUT_SIZE, :]

    # heads + final layer: no nonlinearity between them -> single (HIDDEN, OUT) matmul
    w_heads = jnp.concatenate([wopt, wim], axis=1)             # (HIDDEN, OPT+IM)
    b_heads = jnp.concatenate([bopt, bim], axis=1)             # (1, OPT+IM)
    w2_fold = w_heads @ wf                                     # (HIDDEN, OUT_SIZE)
    b2_fold = b_heads @ wf + bf                                # (1, OUT_SIZE)

    return w1_fold, b1_fold, w2_fold, b2_fold


def pack_params(w1, b1, w2, b2):
    """Block-diagonal copies so PACK logical rows ride in one physical row (lane-dense)."""
    eye = jnp.eye(PACK, dtype=jnp.float32)
    w1_bd = jnp.kron(eye, w1).astype(jnp.bfloat16)             # (115, 160)
    w2_bd = jnp.kron(eye, w2).astype(jnp.bfloat16)             # (160, 30)
    b1_bd = jnp.tile(b1, (1, PACK))                            # (1, 160) f32
    b2_bd = jnp.tile(b2, (1, PACK))                            # (1, 30)  f32
    return w1_bd, b1_bd, w2_bd, b2_bd


def _round_up(n, m):
    return ((n + m - 1) // m) * m


def _choose_tile_rows(bp):
    """Packed-batch tile: large, multiple of 16 (bf16 sublane tile), >=2 grid steps
    when possible so both v7x TensorCores get a share of the 'parallel' axis."""
    if bp <= 16:
        return bp                                  # full-extent block (always legal)
    return min(TILE_ROWS, _round_up((bp + 1) // 2, 16))


# ---- wrapper: packed, batch-tiled, pipelined pallas_call --------------------
def decision_forward(x, params, position=0):
    B = x.shape[0]
    w1, b1, w2, b2 = fold_params(params, position)
    w1_bd, b1_bd, w2_bd, b2_bd = pack_params(w1, b1, w2, b2)

    x = x.astype(jnp.bfloat16)                     # bf16 storage: halves HBM read traffic
    b_pad = _round_up(B, PACK)
    if b_pad != B:
        # <= PACK-1 zero rows so the packed reshape is legal; zeros stay inert through
        # the block-diagonal weights and are sliced off below.
        # TODO(synk): this pad still copies x once in HBM; a tiny tail-epilogue call
        # would avoid even that, omitted for simplicity.
        x = jnp.pad(x, ((0, b_pad - B), (0, 0)))
    bp = b_pad // PACK
    xp = x.reshape(bp, PACKED_IN)                  # free row-major view, no data movement

    tile_rows = _choose_tile_rows(bp)
    grid = (pl.cdiv(bp, tile_rows),)               # ragged final block is masked by Pallas

    out = pl.pallas_call(
        decision_kernel,
        out_shape=jax.ShapeDtypeStruct((bp, PACKED_OUT), jnp.float32),
        grid=grid,
        in_specs=[
            pl.BlockSpec((tile_rows, PACKED_IN), lambda i: (i, 0)),       # x streams over batch
            pl.BlockSpec((PACKED_IN, PACKED_HIDDEN), lambda i: (0, 0)),   # weights stay resident
            pl.BlockSpec((1, PACKED_HIDDEN), lambda i: (0, 0)),
            pl.BlockSpec((PACKED_HIDDEN, PACKED_OUT), lambda i: (0, 0)),
            pl.BlockSpec((1, PACKED_OUT), lambda i: (0, 0)),
        ],
        out_specs=pl.BlockSpec((tile_rows, PACKED_OUT), lambda i: (i, 0)),
        compiler_params=pltpu.CompilerParams(
            dimension_semantics=("parallel",),                            # megacore on v7x
            vmem_limit_bytes=VMEM_LIMIT_BYTES),
    )(xp, w1_bd, b1_bd, w2_bd, b2_bd)

    return out.reshape(b_pad, OUT_SIZE)[:B]        # free view back to (B, 6), drop pad rows


# ---- deterministic synthetic parameter init (PyTorch Linear-style uniform) -
def init_linear(key, fan_in, fan_out):
    kw, kb = jax.random.split(key)
    bound = 1.0 / jnp.sqrt(float(fan_in))
    w = jax.random.uniform(kw, (fan_in, fan_out), jnp.float32, -bound, bound)
    b = jax.random.uniform(kb, (1, fan_out), jnp.float32, -bound, bound)
    return w, b


def init_params(key):
    k1, k2, k3, k4 = jax.random.split(key, 4)
    w1, b1 = init_linear(k1, INPUT_SIZE, HIDDEN)
    wopt, bopt = init_linear(k2, HIDDEN, OPT_SIZE)
    wim, bim = init_linear(k3, HIDDEN, IM_SIZE)
    wf, bf = init_linear(k4, OPT_SIZE + IM_SIZE, OUT_SIZE)
    return (w1, b1, wopt, bopt, wim, bim, wf, bf)


# ---- pure-JAX f32 reference (un-folded, mirrors the PyTorch forward) --------
def reference_forward(x, params, position=0):
    w1, b1, wopt, bopt, wim, bim, wf, bf = params
    x = x.astype(jnp.float32)
    tok = jnp.broadcast_to(_position_token_row(position), (x.shape[0], 2))
    xfull = jnp.concatenate([x, tok], axis=1)
    xbase = (xfull[:, :BASELINE] - INPUT_MEAN + EPS) / (INPUT_STD + EPS)
    xn = jnp.concatenate([xbase, xfull[:, BASELINE:]], axis=1)
    h = jnp.maximum(xn @ w1 + b1, 0.0)
    z = jnp.concatenate([h @ wopt + bopt, h @ wim + bim], axis=1)
    return jax.nn.sigmoid(z @ wf + bf)


if __name__ == "__main__":
    key = jax.random.PRNGKey(0)
    kx, kx2, kp = jax.random.split(key, 3)
    params = init_params(kp)

    # small batch (exercises the <PACK tail pad and single-block grid)
    B = 4
    x = jax.random.normal(kx, (B, MODEL_IN), jnp.float32)
    out = jax.block_until_ready(decision_forward(x, params, position=0))
    ref = reference_forward(x, params, position=0)
    assert out.shape == (B, OUT_SIZE)
    # bf16 storage for x/weights -> compare against the f32 reference with a bf16-level tolerance
    assert jnp.allclose(out, ref, atol=3e-2), "mismatch vs JAX reference (B=4)"

    # non-trivial position token folds correctly
    out2 = jax.block_until_ready(decision_forward(x, params, position=2))
    ref2 = reference_forward(x, params, position=2)
    assert jnp.allclose(out2, ref2, atol=3e-2), "mismatch (position=2)"

    # larger batch: exercises multi-step grid, ragged final block, B % PACK != 0
    B2 = 333
    x2 = jax.random.normal(kx2, (B2, MODEL_IN), jnp.float32)
    out3 = jax.block_until_ready(decision_forward(x2, params, position=1))
    ref3 = reference_forward(x2, params, position=1)
    assert out3.shape == (B2, OUT_SIZE)
    assert jnp.allclose(out3, ref3, atol=3e-2), "mismatch (B=333, position=1)"

    # TODO(synk): dropout / batchnorm / IntegratedGradients attribution paths are
    # training/analysis-only and identity or unused in forward(); not ported.
    print("KERNEL_OK")
</pallas_src>

<mosaic_0001>
module attributes {stable_mosaic.version = 11 : i64} {
  func.func @decision_kernel(%arg0: i32, %arg1: memref<1x115xbf16, #tpu.memory_space<vmem>>, %arg2: memref<115x160xbf16, #tpu.memory_space<vmem>>, %arg3: memref<1x160xf32, #tpu.memory_space<vmem>>, %arg4: memref<160x30xbf16, #tpu.memory_space<vmem>>, %arg5: memref<1x30xf32, #tpu.memory_space<vmem>>, %arg6: memref<1x30xf32, #tpu.memory_space<vmem>>) attributes {dimension_semantics = [#tpu.dimension_semantics<parallel>], iteration_bounds = array<i64: 1>, scalar_prefetch = 0 : i64, scratch_operands = 0 : i64, tpu.core_type = #tpu.core_type<tc>, window_params = [{transform_indices = @transform_0, window_bounds = array<i64: 1, 115>}, {pipeline_mode = #tpu.pipeline_mode<synchronous>, transform_indices = @transform_1, window_bounds = array<i64: 115, 160>}, {pipeline_mode = #tpu.pipeline_mode<synchronous>, transform_indices = @transform_2, window_bounds = array<i64: 1, 160>}, {pipeline_mode = #tpu.pipeline_mode<synchronous>, transform_indices = @transform_3, window_bounds = array<i64: 160, 30>}, {pipeline_mode = #tpu.pipeline_mode<synchronous>, transform_indices = @transform_4, window_bounds = array<i64: 1, 30>}, {transform_indices = @transform_5, window_bounds = array<i64: 1, 30>}]} {
    %c0 = arith.constant 0 : index
    %c0_0 = arith.constant 0 : index
    %0 = vector.load %arg1[%c0, %c0_0] : memref<1x115xbf16, #tpu.memory_space<vmem>>, vector<1x115xbf16>
    %c0_1 = arith.constant 0 : index
    %c0_2 = arith.constant 0 : index
    %1 = vector.load %arg2[%c0_1, %c0_2] : memref<115x160xbf16, #tpu.memory_space<vmem>>, vector<115x160xbf16>
    %cst = arith.constant dense<0.000000e+00> : vector<1x160xf32>
    %2 = tpu.matmul %0, %1, %cst {dimension_numbers = #tpu.dot_dimension_numbers<[1], [0], [0], [1], [0, 0, 1, 1], [], []>} : vector<1x115xbf16>, vector<115x160xbf16>, vector<1x160xf32> -> vector<1x160xf32>
    %c0_3 = arith.constant 0 : index
    %c0_4 = arith.constant 0 : index
    %3 = vector.load %arg3[%c0_3, %c0_4] : memref<1x160xf32, #tpu.memory_space<vmem>>, vector<1x160xf32>
    %4 = arith.addf %2, %3 : vector<1x160xf32>
    %cst_5 = arith.constant 0.000000e+00 : f32
    %5 = vector.broadcast %cst_5 : f32 to vector<1x160xf32>
    %6 = arith.maximumf %4, %5 : vector<1x160xf32>
    %7 = arith.truncf %6 : vector<1x160xf32> to vector<1x160xbf16>
    %c0_6 = arith.constant 0 : index
    %c0_7 = arith.constant 0 : index
    %8 = vector.load %arg4[%c0_6, %c0_7] : memref<160x30xbf16, #tpu.memory_space<vmem>>, vector<160x30xbf16>
    %cst_8 = arith.constant dense<0.000000e+00> : vector<1x30xf32>
    %9 = tpu.matmul %7, %8, %cst_8 {dimension_numbers = #tpu.dot_dimension_numbers<[1], [0], [0], [1], [0, 0, 1, 1], [], []>} : vector<1x160xbf16>, vector<160x30xbf16>, vector<1x30xf32> -> vector<1x30xf32>
    %c0_9 = arith.constant 0 : index
    %c0_10 = arith.constant 0 : index
    %10 = vector.load %arg5[%c0_9, %c0_10] : memref<1x30xf32, #tpu.memory_space<vmem>>, vector<1x30xf32>
    %11 = arith.addf %9, %10 : vector<1x30xf32>
    %12 = arith.negf %11 : vector<1x30xf32>
    %13 = math.exp %12 : vector<1x30xf32>
    %cst_11 = arith.constant 1.000000e+00 : f32
    %14 = vector.broadcast %cst_11 : f32 to vector<1x30xf32>
    %15 = arith.addf %14, %13 : vector<1x30xf32>
    %16 = arith.divf %14, %15 : vector<1x30xf32>
    %c0_12 = arith.constant 0 : index
    %c0_13 = arith.constant 0 : index
    %17 = vector.load %arg6[%c0_12, %c0_13] : memref<1x30xf32, #tpu.memory_space<vmem>>, vector<1x30xf32>
    tpu.vector_store %arg6[%c0_12, %c0_13], %16 {strides = array<i32>} : memref<1x30xf32, #tpu.memory_space<vmem>>, vector<1x30xf32>,
    return
  }
  func.func @transform_0(%arg0: i32) -> (i32, i32) {
    %c0_i32 = arith.constant 0 : i32
    %c0_i32_0 = arith.constant 0 : i32
    return %arg0, %c0_i32 : i32, i32
  }
  func.func @transform_1(%arg0: i32) -> (i32, i32) {
    %c0_i32 = arith.constant 0 : i32
    %c0_i32_0 = arith.constant 0 : i32
    %c0_i32_1 = arith.constant 0 : i32
    return %c0_i32, %c0_i32_0 : i32, i32
  }
  func.func @transform_2(%arg0: i32) -> (i32, i32) {
    %c0_i32 = arith.constant 0 : i32
    %c0_i32_0 = arith.constant 0 : i32
    %c0_i32_1 = arith.constant 0 : i32
    return %c0_i32, %c0_i32_0 : i32, i32
  }
  func.func @transform_3(%arg0: i32) -> (i32, i32) {
    %c0_i32 = arith.constant 0 : i32
    %c0_i32_0 = arith.constant 0 : i32
    %c0_i32_1 = arith.constant 0 : i32
    return %c0_i32, %c0_i32_0 : i32, i32
  }
  func.func @transform_4(%arg0: i32) -> (i32, i32) {
    %c0_i32 = arith.constant 0 : i32
    %c0_i32_0 = arith.constant 0 : i32
    %c0_i32_1 = arith.constant 0 : i32
    return %c0_i32, %c0_i32_0 : i32, i32
  }
  func.func @transform_5(%arg0: i32) -> (i32, i32) {
    %c0_i32 = arith.constant 0 : i32
    %c0_i32_0 = arith.constant 0 : i32
    return %arg0, %c0_i32 : i32, i32
  }
}

</mosaic_0001>

<llo_original>
// kernel: tpu_custom_call.1
$region0: #{tpu_custom_call.1}
  #allocation0 [shape = 'u32[]', space=smem, size = 0x4, offset = 0x4, fixed_abs, tag = 'smem constant byte address 0x4 - core index']
  #allocation1 [shape = 'u32[144,128]{1,0:T(1,128)}', space=vmem, size = 0x12000, scoped, tag = 'internal scratch']
  %s0 = inlined_call_operand.vmem [shape: bf16[1,115], index: 0, kind: input, shape index: {}]
  %s1 = inlined_call_operand.vmem [shape: bf16[115,160], index: 1, kind: input, shape index: {}]
  %s2 = inlined_call_operand.vmem [shape: f32[1,160], index: 2, kind: input, shape index: {}]
  %s3 = inlined_call_operand.vmem [shape: bf16[160,30], index: 3, kind: input, shape index: {}]
  %s4 = inlined_call_operand.vmem [shape: f32[1,30], index: 4, kind: input, shape index: {}]
  %s5 = inlined_call_operand.hbm [shape: f32[1,30], index: 5, kind: output, shape index: {}]
  %s6 = sld [smem:[#allocation0]]
  $region30: #{tpu_custom_call.1} parent=0
    _
  %s8 = ssub.s32 1, %s6
  %s9 = scalar_select 0, %s8, %s6
  $region1: #{tpu_custom_call.1} parent=0
    #allocation2 [shape = 'u8[512]{0}', space=vmem, size = 0x400, scoped, tag = 'output window, operand 0, single buffered']
    #allocation3 [shape = 's32[1]{0}', space=sflag, size = 0x4, scoped, tag = 'scoped memory for tpu_custom_call.1']
    %10 = vsyncpa [#allocation3], 0
    // Predicated region
    $region2: #{tpu_custom_call.1} parent=1 // pred_check
      _
    $region3: #{tpu_custom_call.1} parent=1 // pred_check_branch
      %12 = sbr.rel (0) target = $region5
    $region4: #{tpu_custom_call.1} parent=1 // pred_region
      _
    $region5: #{tpu_custom_call.1} parent=1 // pred_fallthru
      _
    // Predicated region
    $region6: #{tpu_custom_call.1} parent=1 // pred_check
      _
    $region7: #{tpu_custom_call.1} parent=1 // pred_check_branch
      %14 = sbr.rel (0) target = $region9
    $region8: #{tpu_custom_call.1} parent=1 // pred_region
      _
    $region9: #{tpu_custom_call.1} parent=1 // pred_fallthru
      _
    // Predicated region
    $region10: #{tpu_custom_call.1} parent=1 // pred_check
      _
    $region11: #{tpu_custom_call.1} parent=1 // pred_check_branch
      %16 = sbr.rel (0) target = $region13
    $region12: #{tpu_custom_call.1} parent=1 // pred_region
      _
    $region13: #{tpu_custom_call.1} parent=1 // pred_fallthru
      _
    // Predicated region
    $region14: #{tpu_custom_call.1} parent=1 // pred_check
      _
    $region15: #{tpu_custom_call.1} parent=1 // pred_check_branch
      %18 = sbr.rel (0) target = $region17
    $region16: #{tpu_custom_call.1} parent=1 // pred_region
      _
    $region17: #{tpu_custom_call.1} parent=1 // pred_fallthru
      _
    // Predicated region
    $region18: #{tpu_custom_call.1} parent=1 // pred_check
      _
    $region19: #{tpu_custom_call.1} parent=1 // pred_check_branch
      %20 = sbr.rel (0) target = $region21
    $region20: #{tpu_custom_call.1} parent=1 // pred_region
      _
    $region21: #{tpu_custom_call.1} parent=1 // pred_fallthru
      _
    %v22 = vld [vmem:[%s0] sm:$0x1]
    %v23 = vld [vmem:[%s1] sm:$0xff]
    %v24 = vld [vmem:[%s1 + $0x8] sm:$0xff]
    %v25 = vld [vmem:[%s1 + $0x10] sm:$0xff]
    %v26 = vld [vmem:[%s1 + $0x18] sm:$0xff]
    %v27 = vld [vmem:[%s1 + $0x20] sm:$0xff]
    %v28 = vld [vmem:[%s1 + $0x28] sm:$0xff]
    %v29 = vld [vmem:[%s1 + $0x30] sm:$0xff]
    %v30 = vld [vmem:[%s1 + $0x38] sm:$0xff]
    %v31 = vld [vmem:[%s1 + $0x40] sm:$0xff]
    %v32 = vld [vmem:[%s1 + $0x48] sm:$0xff]
    %v33 = vld [vmem:[%s1 + $0x50] sm:$0xff]
    %v34 = vld [vmem:[%s1 + $0x58] sm:$0xff]
    %v35 = vld [vmem:[%s1 + $0x60] sm:$0xff]
    %v36 = vld [vmem:[%s1 + $0x68] sm:$0xff]
    %v37 = vld [vmem:[%s1 + $0x70] sm:$0x33]
    %v38 = vld [vmem:[%s2] sm:$0x3]
    %v54 = vunpack.c.l.b16 %v23
    %v55 = vunpack.c.h.b16 %v23
    %v56 = vunpack.c.l.b16 %v24
    %v57 = vunpack.c.h.b16 %v24
    %v58 = vunpack.c.l.b16 %v25
    %v59 = vunpack.c.h.b16 %v25
    %v60 = vunpack.c.l.b16 %v26
    %v61 = vunpack.c.h.b16 %v26
    %v62 = vunpack.c.l.b16 %v27
    %v63 = vunpack.c.h.b16 %v27
    %v64 = vunpack.c.l.b16 %v28
    %v65 = vunpack.c.h.b16 %v28
    %v66 = vunpack.c.l.b16 %v29
    %v67 = vunpack.c.h.b16 %v29
    %v68 = vunpack.c.l.b16 %v30
    %v69 = vunpack.c.h.b16 %v30
    %v70 = vunpack.c.l.b16 %v31
    %v71 = vunpack.c.h.b16 %v31
    %v72 = vunpack.c.l.b16 %v32
    %v73 = vunpack.c.h.b16 %v32
    %v74 = vunpack.c.l.b16 %v33
    %v75 = vunpack.c.h.b16 %v33
    %v76 = vunpack.c.l.b16 %v34
    %v77 = vunpack.c.h.b16 %v34
    %v78 = vunpack.c.l.b16 %v35
    %v79 = vunpack.c.h.b16 %v35
    %v80 = vunpack.c.l.b16 %v36
    %v81 = vunpack.c.h.b16 %v36
    %v82 = vunpack.c.l.b16 %v37
    %v83 = vunpack.c.h.b16 %v37
    %v84 = vpack.c.b16 %v56, %v54
    %v85 = vpack.c.b16 %v57, %v55
    %v86 = vpack.c.b16 %v60, %v58
    %v87 = vpack.c.b16 %v61, %v59
    %v88 = vpack.c.b16 %v64, %v62
    %v89 = vpack.c.b16 %v65, %v63
    %v90 = vpack.c.b16 %v68, %v66
    %v91 = vpack.c.b16 %v69, %v67
    %v92 = vpack.c.b16 %v72, %v70
    %v93 = vpack.c.b16 %v73, %v71
    %v94 = vpack.c.b16 %v76, %v74
    %v95 = vpack.c.b16 %v77, %v75
    %v96 = vpack.c.b16 %v80, %v78
    %v97 = vpack.c.b16 %v81, %v79
    %v98 = vpack.c.b16 %v82, %v82
    %v99 = vpack.c.b16 %v83, %v83
    %v115 = vlaneseq
    %v116 = vshrl.u32 %v115, 7
    %v117 = vsub.s32 0, %v116
    %v118 = vrot.slane %v38, %v117
    %v119 = vlaneseq
    %v120 = vshrl.u32 %v119, 7
    %v121 = vsub.s32 1, %v120
    %v122 = vrot.slane %v38, %v121
    %vm125 = vcmask 941056
    %v127 = vsel %vm125, %v22, 0
    %vm129 = vcmask 1040384
    %vm130 = vcmask 1041408
    %v131 = vsel %vm129, 4294967295, 65535
    %v132 = vsel %vm130, %v131, 0
    %v134 = vand.u32 %v98, %v132
    %v137 = vand.u32 %v99, %v132
    %139 = vmatprep.subr.bf16.mxu0 %v85
    %140 = vmatpush1.bf16.msra.mxu0 %v84
    %141 = vmatprep.subr.bf16.mxu0 %v87
    %142 = vmatpush1.bf16.msra.mxu0 %v86
    %143 = vmatprep.subr.bf16.mxu0 %v89
    %144 = vmatpush1.bf16.msra.mxu0 %v88
    %145 = vmatprep.subr.bf16.mxu0 %v91
    %146 = vmatpush1.bf16.msra.mxu0 %v90
    %147 = vmatprep.subr.bf16.mxu0 %v93
    %148 = vmatpush1.bf16.msra.mxu0 %v92
    %149 = vmatprep.subr.bf16.mxu0 %v95
    %150 = vmatpush1.bf16.msra.mxu0 %v94
    %151 = vmatprep.subr.bf16.mxu0 %v97
    %152 = vmatpush1.bf16.msra.mxu0 %v96
    %153 = vmatprep.subr.bf16.mxu0 %v137
    %154 = vmatpush1.bf16.msra.mxu0 %v134
    %155 = vmatprep.subr.bf16.mxu0 0
    %156 = vmatpush1.bf16.msra.mxu0 0
    %157 = vmatprep.subr.bf16.mxu0 0
    %158 = vmatpush1.bf16.msra.mxu0 0
    %159 = vmatprep.subr.bf16.mxu0 0
    %160 = vmatpush1.bf16.msra.mxu0 0
    %161 = vmatprep.subr.bf16.mxu0 0
    %162 = vmatpush1.bf16.msra.mxu0 0
    %163 = vmatprep.subr.bf16.mxu0 0
    %164 = vmatpush1.bf16.msra.mxu0 0
    %165 = vmatprep.subr.bf16.mxu0 0
    %166 = vmatpush1.bf16.msra.mxu0 0
    %167 = vmatprep.subr.bf16.mxu0 0
    %168 = vmatpush1.bf16.msra.mxu0 0
    %169 = vmatprep.subr.bf16.mxu0 0
    %170 = vmatpush1.bf16.msra.mxu0 0
    %171 = vmatprep.mubr.bf16.mxu0 0
    %172 = vmatmul.mubr.bf16.gmra.mrb[0].mxu0 %v127
    %v173 = vpop.f32.mrb[0].mxu0
    %v174 = vadd.f32 %v118, %v173
    %v175 = vpop.f32.mrb[0].mxu0
    %v176 = vadd.f32 %v122, %v175
    %v177 = vpop.f32.mrb[0].mxu0
    %v178 = vpop.f32.mrb[0].mxu0
    %179 = vdwg.mxu0
    %v180 = vmax.f32 %v174, 0.0
    %v181 = vmax.f32 %v176, 0.0
    %v182 = vpack.c.bf16 %v180, %v180
    %v183 = vpack.c.bf16 %v181, %v181
    %v184 = vld [vmem:[%s3] sm:$0xf]
    %v185 = vld [vmem:[%s3 + $0x4] sm:$0xf]
    %v186 = vld [vmem:[%s3 + $0x8] sm:$0xf]
    %v187 = vld [vmem:[%s3 + $0xc] sm:$0xf]
    %v188 = vld [vmem:[%s3 + $0x10] sm:$0xf]
    %v189 = vld [vmem:[%s3 + $0x14] sm:$0xf]
    %v190 = vld [vmem:[%s3 + $0x18] sm:$0xf]
    %v191 = vld [vmem:[%s3 + $0x1c] sm:$0xf]
    %v192 = vld [vmem:[%s3 + $0x20] sm:$0xf]
    %v193 = vld [vmem:[%s3 + $0x24] sm:$0xf]
    %v194 = vld [vmem:[%s3 + $0x28] sm:$0xf]
    %v195 = vld [vmem:[%s3 + $0x2c] sm:$0xf]
    %v196 = vld [vmem:[%s3 + $0x30] sm:$0xf]
    %v197 = vld [vmem:[%s3 + $0x34] sm:$0xf]
    %v198 = vld [vmem:[%s3 + $0x38] sm:$0xf]
    %v199 = vld [vmem:[%s3 + $0x3c] sm:$0xf]
    %v200 = vld [vmem:[%s3 + $0x40] sm:$0xf]
    %v201 = vld [vmem:[%s3 + $0x44] sm:$0xf]
    %v202 = vld [vmem:[%s3 + $0x48] sm:$0xf]
    %v203 = vld [vmem:[%s3 + $0x4c] sm:$0xf]
    %v204 = vld [vmem:[%s4] sm:$0x1]
    %v225 = vunpack.c.l.b16 %v184
    %v226 = vunpack.c.l.b16 %v185
    %v227 = vunpack.c.l.b16 %v186
    %v228 = vunpack.c.l.b16 %v187
    %v229 = vunpack.c.l.b16 %v188
    %v230 = vunpack.c.l.b16 %v189
    %v231 = vunpack.c.l.b16 %v190
    %v232 = vunpack.c.l.b16 %v191
    %v233 = vunpack.c.l.b16 %v192
    %v234 = vunpack.c.l.b16 %v193
    %v235 = vunpack.c.l.b16 %v194
    %v236 = vunpack.c.l.b16 %v195
    %v237 = vunpack.c.l.b16 %v196
    %v238 = vunpack.c.l.b16 %v197
    %v239 = vunpack.c.l.b16 %v198
    %v240 = vunpack.c.l.b16 %v199
    %v241 = vunpack.c.l.b16 %v200
    %v242 = vunpack.c.l.b16 %v201
    %v243 = vunpack.c.l.b16 %v202
    %v244 = vunpack.c.l.b16 %v203
    %v245 = vpack.c.b16 %v226, %v225
    %v246 = vpack.c.b16 %v228, %v227
    %v247 = vpack.c.b16 %v230, %v229
    %v248 = vpack.c.b16 %v232, %v231
    %v249 = vpack.c.b16 %v234, %v233
    %v250 = vpack.c.b16 %v236, %v235
    %v251 = vpack.c.b16 %v238, %v237
    %v252 = vpack.c.b16 %v240, %v239
    %v253 = vpack.c.b16 %v242, %v241
    %v254 = vpack.c.b16 %v244, %v243
    %vm265 = vcmask 261120
    %v267 = vsel %vm265, %v183, 0
    %269 = vmatprep.subr.bf16.mxu0 0
    %270 = vmatpush1.bf16.msra.mxu0 %v245
    %271 = vmatprep.subr.bf16.mxu0 0
    %272 = vmatpush1.bf16.msra.mxu0 %v246
    %273 = vmatprep.subr.bf16.mxu0 0
    %274 = vmatpush1.bf16.msra.mxu0 %v247
    %275 = vmatprep.subr.bf16.mxu0 0
    %276 = vmatpush1.bf16.msra.mxu0 %v248
    %277 = vmatprep.subr.bf16.mxu0 0
    %278 = vmatpush1.bf16.msra.mxu0 %v249
    %279 = vmatprep.subr.bf16.mxu0 0
    %280 = vmatpush1.bf16.msra.mxu0 %v250
    %281 = vmatprep.subr.bf16.mxu0 0
    %282 = vmatpush1.bf16.msra.mxu0 %v251
    %283 = vmatprep.subr.bf16.mxu0 0
    %284 = vmatpush1.bf16.msra.mxu0 %v252
    %285 = vmatprep.subr.bf16.mxu0 0
    %286 = vmatpush1.bf16.msra.mxu0 %v253
    %287 = vmatprep.subr.bf16.mxu0 0
    %288 = vmatpush1.bf16.msra.mxu0 %v254
    %289 = vmatprep.subr.bf16.mxu0 0
    %290 = vmatpush1.bf16.msra.mxu0 0
    %291 = vmatprep.subr.bf16.mxu0 0
    %292 = vmatpush1.bf16.msra.mxu0 0
    %293 = vmatprep.subr.bf16.mxu0 0
    %294 = vmatpush1.bf16.msra.mxu0 0
    %295 = vmatprep.subr.bf16.mxu0 0
    %296 = vmatpush1.bf16.msra.mxu0 0
    %297 = vmatprep.subr.bf16.mxu0 0
    %298 = vmatpush1.bf16.msra.mxu0 0
    %299 = vmatprep.subr.bf16.mxu0 0
    %300 = vmatpush1.bf16.msra.mxu0 0
    %301 = vmatprep.mubr.bf16.mxu0 %v267
    %302 = vmatmul.mubr.bf16.gmra.mrb[0].mxu0 %v182
    %v303 = vpop.f32.mrb[0].mxu0
    %v304 = vadd.f32 %v204, %v303
    %v305 = vpop.f32.mrb[0].mxu0
    %v306 = vpop.f32.mrb[0].mxu0
    %v307 = vpop.f32.mrb[0].mxu0
    %308 = vdwg.mxu0
    %v309 = vxor.u32 %v304, 2147483648
    %v310 = vmul.f32 %v309, 1.442695
    %v311 = vpow.pop %v310
    %v312 = vadd.f32 %v311, 1.0
    %v313 = vrcp.pop %v312
    %v314 = vmul.f32 1.0, %v313
    %vm315 = vcmask 237568
    %316 = vst.msk [vmem:[#allocation2] sm:$0x1] %vm315, %v314
    // Predicated region
    $region22: #{tpu_custom_call.1} parent=1 // pred_check
      _
    $region23: #{tpu_custom_call.1} parent=1 // pred_check_branch
      %318 = sbr.rel (0) target = $region25
    $region24: #{tpu_custom_call.1} parent=1 // pred_region
      %s320 = ssub.s32 16, 16
      %321 = vsyncadd [#allocation3], %s320
      %s323 = sshll.u32 [#allocation2], 4
      %s324 = int_to_ptr.vmem [resolvable:$true] %s323
      %326 = dma.vmem_to_hbm [thread:$0]  %s324, 16, %s5, [#allocation3]
    $region25: #{tpu_custom_call.1} parent=1 // pred_fallthru
      _
    // Predicated region
    $region26: #{tpu_custom_call.1} parent=1 // pred_check
      _
    $region27: #{tpu_custom_call.1} parent=1 // pred_check_branch
      %328 = sbr.rel (0) target = $region29
    $region28: #{tpu_custom_call.1} parent=1 // pred_region
      %329 = dma.done [#allocation3], 16
    $region29: #{tpu_custom_call.1} parent=1 // pred_fallthru
      _
    %330 = vsyncpa [#allocation3], 1

</llo_original>
